<compile_context>
chip_gen: v6e
topology: v6e:2x2x1
jax: 0.10.0
libtpu: 0.0.40
codegen_flags: <defaults>
</compile_context>

<pallas_src>
import functools

import numpy as np

import jax
import jax.numpy as jnp
from jax.experimental import pallas as pl
from jax.experimental.pallas import tpu as pltpu


def _sepconv_kernel(x_ref, wd_ref, wp_ref, mask_ref, o_ref, *, shifts, always_valid):
    # x_ref:    (Cin_p, H*W)   bf16, one batch element, channels on sublanes,
    #                          flattened spatial on lanes (lane-dense).
    # wd_ref:   (Cin_p, K*K)   f32 depthwise weights, tap index on lanes.
    # wp_ref:   (Cout, Cin_p)  bf16 pointwise weights.
    # mask_ref: (K*K, H*W)     f32 {0,1} per-tap validity masks (precomputed).
    # o_ref:    (Cout, H*W)    f32 lane-dense output == flattened NCHW.
    n = x_ref.shape[-1]
    xf = x_ref[...].astype(jnp.float32)            # single cast, then reused by taps
    wdv = wd_ref[...]                              # (Cin_p, K*K) f32

    # --- depthwise conv on the VPU: accumulate K*K shifted+masked taps (f32) ---
    acc = None
    for t, s in enumerate(shifts):
        if s == 0:
            shifted = xf
        else:
            # shifted[:, m] = xf[:, (m - s) mod n] == x at spatial offset (oh, ow);
            # XLU lane rotation (pltpu.roll == jnp.roll semantics).
            shifted = pltpu.roll(xf, shift=s, axis=1)
        contrib = shifted * wdv[:, t:t + 1]        # per-channel depthwise weight
        if not always_valid[t]:
            contrib = contrib * mask_ref[t:t + 1, :]   # zero out-of-image reads
        acc = contrib if acc is None else acc + contrib

    # --- pointwise conv on the MXU: (Cout, Cin_p) @ (Cin_p, n), bf16 in, f32 acc ---
    o_ref[...] = jnp.dot(wp_ref[...], acc.astype(jnp.bfloat16),
                         preferred_element_type=jnp.float32).astype(o_ref.dtype)


@functools.partial(jax.jit,
                   static_argnames=("kernel_size", "stride", "padding", "dilation"))
def separable_conv2d(x_nchw, wd_t, wp_t, *, kernel_size=3, stride=1,
                     padding=0, dilation=1):
    """x_nchw: (N, Cin, H, W) f32. wd_t: (Cin,1,K,K), wp_t: (Cout,Cin,1,1) (PyTorch layouts)."""
    N, Cin, H, W = x_nchw.shape
    Cout = wp_t.shape[0]
    K = kernel_size

    if stride != 1:
        raise NotImplementedError("stride > 1 not wired")  # TODO(synk)
    H_out = H + 2 * padding - dilation * (K - 1)
    W_out = W + 2 * padding - dilation * (K - 1)
    if (H_out, W_out) != (H, W):
        raise NotImplementedError("only 'same'-size convs wired")  # TODO(synk)

    n = H * W

    # Pad Cin up to bf16 sublane packing (16).  No-op when Cin % 16 == 0.
    Cin_p = -(-Cin // 16) * 16
    pad_c = Cin_p - Cin

    # Input: flattened NCHW, bf16 for DMA/VMEM savings.  (Reshape is free; the pad
    # only happens for small-channel configs.)
    x2 = x_nchw.reshape(N, Cin, n)
    if pad_c:
        x2 = jnp.pad(x2, ((0, 0), (0, pad_c), (0, 0)))
    x2 = x2.astype(jnp.bfloat16)

    # Depthwise weights: (Cin_p, K*K) f32, tap index t = kh*K + kw on lanes.
    wd = wd_t[:, 0].reshape(Cin, K * K)
    if pad_c:
        wd = jnp.pad(wd, ((0, pad_c), (0, 0)))
    wd = wd.astype(jnp.float32)

    # Pointwise weights: (Cout, Cin_p) bf16 (MXU operand).
    wp = wp_t[:, :, 0, 0]
    if pad_c:
        wp = jnp.pad(wp, ((0, 0), (0, pad_c)))
    wp = wp.astype(jnp.bfloat16)

    # Static per-tap shift amounts + validity masks (trace-time numpy constants).
    rows = np.arange(n, dtype=np.int64) // W
    cols = np.arange(n, dtype=np.int64) % W
    mask_np = np.zeros((K * K, n), np.float32)
    shifts, always_valid = [], []
    for t in range(K * K):
        kh, kw = divmod(t, K)
        oh = kh * dilation - padding
        ow = kw * dilation - padding
        shifts.append((-(oh * W + ow)) % n)        # roll amount for jnp.roll semantics
        v = ((rows + oh >= 0) & (rows + oh < H) &
             (cols + ow >= 0) & (cols + ow < W))
        mask_np[t] = v.astype(np.float32)
        always_valid.append(bool(v.all()))
    masks = jnp.asarray(mask_np)
    shifts = tuple(shifts)
    always_valid = tuple(always_valid)

    # Advisory cost so XLA can overlap this call with the other ASPP branches.
    flops = N * (2 * K * K * Cin_p * n + 2 * Cin_p * Cout * n)
    bytes_accessed = (N * Cin_p * n * 2            # x (bf16)
                      + Cin_p * K * K * 4          # depthwise weights (f32)
                      + Cout * Cin_p * 2           # pointwise weights (bf16)
                      + K * K * n * 4              # masks (f32)
                      + N * Cout * n * 4)          # output (f32)

    out = pl.pallas_call(
        functools.partial(_sepconv_kernel, shifts=shifts, always_valid=always_valid),
        out_shape=jax.ShapeDtypeStruct((N, Cout, n), jnp.float32),
        grid=(N,),
        in_specs=[pl.BlockSpec((None, Cin_p, n), lambda b: (b, 0, 0)),
                  pl.BlockSpec((Cin_p, K * K), lambda b: (0, 0)),
                  pl.BlockSpec((Cout, Cin_p), lambda b: (0, 0)),
                  pl.BlockSpec((K * K, n), lambda b: (0, 0))],
        out_specs=pl.BlockSpec((None, Cout, n), lambda b: (b, 0, 0)),
        compiler_params=pltpu.CompilerParams(
            dimension_semantics=("parallel",),
            vmem_limit_bytes=32 * 1024 * 1024),
        cost_estimate=pl.CostEstimate(flops=flops, transcendentals=0,
                                      bytes_accessed=bytes_accessed),
    )(x2, wd, wp, masks)

    return out.reshape(N, Cout, H, W)                            # already NCHW


def separable_conv2d_reference(x, wd_t, wp_t, *, padding, dilation):
    """Pure-JAX reference (NCHW) for validation."""
    dn = ("NCHW", "OIHW", "NCHW")
    Cin = x.shape[1]
    y = jax.lax.conv_general_dilated(
        x, wd_t, window_strides=(1, 1),
        padding=[(padding, padding), (padding, padding)],
        rhs_dilation=(dilation, dilation), feature_group_count=Cin,
        dimension_numbers=dn, precision=jax.lax.Precision.HIGHEST)
    y = jax.lax.conv_general_dilated(
        y, wp_t, (1, 1), [(0, 0), (0, 0)], dimension_numbers=dn,
        precision=jax.lax.Precision.HIGHEST)
    return y


if __name__ == "__main__":
    N, Cin, Cout, H, W = 2, 4, 8, 16, 16
    K, rate = 3, 2    # SeparableConv2d(Cin, Cout, 3, stride=1, padding=rate, dilation=rate)

    key = jax.random.PRNGKey(0)
    kx, kd, kp = jax.random.split(key, 3)

    x = jax.random.normal(kx, (N, Cin, H, W), jnp.float32)
    # Deterministic kaiming-normal-style init, PyTorch weight layouts (no bias).
    wd_t = jax.random.normal(kd, (Cin, 1, K, K), jnp.float32) * (2.0 / (K * K)) ** 0.5
    wp_t = jax.random.normal(kp, (Cout, Cin, 1, 1), jnp.float32) * (2.0 / Cin) ** 0.5

    out = jax.block_until_ready(
        separable_conv2d(x, wd_t, wp_t, kernel_size=K, padding=rate, dilation=rate))
    ref = separable_conv2d_reference(x, wd_t, wp_t, padding=rate, dilation=rate)

    assert out.shape == (N, Cout, H, W), out.shape
    max_err = float(jnp.max(jnp.abs(out - ref)))
    # bf16 MXU inputs -> looser tolerance than the pure-f32 variant (real bugs are O(1)).
    assert jnp.allclose(out, ref, atol=1e-1, rtol=5e-2), f"max abs err {max_err}"
    print("KERNEL_OK")
</pallas_src>

<mosaic_0001>
module attributes {stable_mosaic.version = 11 : i64} {
  func.func @_sepconv_kernel(%arg0: i32, %arg1: memref<1x16x256xbf16, #tpu.memory_space<vmem>>, %arg2: memref<16x9xf32, #tpu.memory_space<vmem>>, %arg3: memref<8x16xbf16, #tpu.memory_space<vmem>>, %arg4: memref<9x256xf32, #tpu.memory_space<vmem>>, %arg5: memref<1x8x256xf32, #tpu.memory_space<vmem>>) attributes {dimension_semantics = [#tpu.dimension_semantics<parallel>], iteration_bounds = array<i64: 2>, scalar_prefetch = 0 : i64, scratch_operands = 0 : i64, tpu.core_type = #tpu.core_type<tc>, window_params = [{transform_indices = @transform_0, window_bounds = array<i64: 1, 16, 256>}, {pipeline_mode = #tpu.pipeline_mode<synchronous>, transform_indices = @transform_1, window_bounds = array<i64: 16, 9>}, {pipeline_mode = #tpu.pipeline_mode<synchronous>, transform_indices = @transform_2, window_bounds = array<i64: 8, 16>}, {pipeline_mode = #tpu.pipeline_mode<synchronous>, transform_indices = @transform_3, window_bounds = array<i64: 9, 256>}, {transform_indices = @transform_4, window_bounds = array<i64: 1, 8, 256>}]} {
    %c0 = arith.constant 0 : index
    %c0_0 = arith.constant 0 : index
    %c0_1 = arith.constant 0 : index
    %0 = vector.load %arg1[%c0, %c0_0, %c0_1] : memref<1x16x256xbf16, #tpu.memory_space<vmem>>, vector<1x16x256xbf16>
    %1 = vector.shape_cast %0 : vector<1x16x256xbf16> to vector<16x256xbf16>
    %2 = arith.extf %1 : vector<16x256xbf16> to vector<16x256xf32>
    %c0_2 = arith.constant 0 : index
    %c0_3 = arith.constant 0 : index
    %3 = vector.load %arg2[%c0_2, %c0_3] : memref<16x9xf32, #tpu.memory_space<vmem>>, vector<16x9xf32>
    %c34_i32 = arith.constant 34 : i32
    %4 = tpu.dynamic_rotate %2 by %c34_i32 dim 1 : vector<16x256xf32>, i32 -> vector<16x256xf32>
    %5 = vector.extract_strided_slice %3 {offsets = [0, 0], sizes = [16, 1], strides = [1, 1]} : vector<16x9xf32> to vector<16x1xf32>
    %6 = vector.broadcast %5 : vector<16x1xf32> to vector<16x256xf32>
    %7 = arith.mulf %4, %6 : vector<16x256xf32>
    %c0_4 = arith.constant 0 : index
    %c0_5 = arith.constant 0 : index
    %8 = vector.load %arg4[%c0_4, %c0_5] : memref<9x256xf32, #tpu.memory_space<vmem>>, vector<1x256xf32>
    %9 = vector.broadcast %8 : vector<1x256xf32> to vector<16x256xf32>
    %10 = arith.mulf %7, %9 : vector<16x256xf32>
    %c32_i32 = arith.constant 32 : i32
    %11 = tpu.dynamic_rotate %2 by %c32_i32 dim 1 : vector<16x256xf32>, i32 -> vector<16x256xf32>
    %12 = vector.extract_strided_slice %3 {offsets = [0, 1], sizes = [16, 1], strides = [1, 1]} : vector<16x9xf32> to vector<16x1xf32>
    %13 = vector.broadcast %12 : vector<16x1xf32> to vector<16x256xf32>
    %14 = arith.mulf %11, %13 : vector<16x256xf32>
    %c1 = arith.constant 1 : index
    %c0_6 = arith.constant 0 : index
    %15 = vector.load %arg4[%c1, %c0_6] : memref<9x256xf32, #tpu.memory_space<vmem>>, vector<1x256xf32>
    %16 = vector.broadcast %15 : vector<1x256xf32> to vector<16x256xf32>
    %17 = arith.mulf %14, %16 : vector<16x256xf32>
    %18 = arith.addf %10, %17 : vector<16x256xf32>
    %c30_i32 = arith.constant 30 : i32
    %19 = tpu.dynamic_rotate %2 by %c30_i32 dim 1 : vector<16x256xf32>, i32 -> vector<16x256xf32>
    %20 = vector.extract_strided_slice %3 {offsets = [0, 2], sizes = [16, 1], strides = [1, 1]} : vector<16x9xf32> to vector<16x1xf32>
    %21 = vector.broadcast %20 : vector<16x1xf32> to vector<16x256xf32>
    %22 = arith.mulf %19, %21 : vector<16x256xf32>
    %c2 = arith.constant 2 : index
    %c0_7 = arith.constant 0 : index
    %23 = vector.load %arg4[%c2, %c0_7] : memref<9x256xf32, #tpu.memory_space<vmem>>, vector<1x256xf32>
    %24 = vector.broadcast %23 : vector<1x256xf32> to vector<16x256xf32>
    %25 = arith.mulf %22, %24 : vector<16x256xf32>
    %26 = arith.addf %18, %25 : vector<16x256xf32>
    %c2_i32 = arith.constant 2 : i32
    %27 = tpu.dynamic_rotate %2 by %c2_i32 dim 1 : vector<16x256xf32>, i32 -> vector<16x256xf32>
    %28 = vector.extract_strided_slice %3 {offsets = [0, 3], sizes = [16, 1], strides = [1, 1]} : vector<16x9xf32> to vector<16x1xf32>
    %29 = vector.broadcast %28 : vector<16x1xf32> to vector<16x256xf32>
    %30 = arith.mulf %27, %29 : vector<16x256xf32>
    %c3 = arith.constant 3 : index
    %c0_8 = arith.constant 0 : index
    %31 = vector.load %arg4[%c3, %c0_8] : memref<9x256xf32, #tpu.memory_space<vmem>>, vector<1x256xf32>
    %32 = vector.broadcast %31 : vector<1x256xf32> to vector<16x256xf32>
    %33 = arith.mulf %30, %32 : vector<16x256xf32>
    %34 = arith.addf %26, %33 : vector<16x256xf32>
    %35 = vector.extract_strided_slice %3 {offsets = [0, 4], sizes = [16, 1], strides = [1, 1]} : vector<16x9xf32> to vector<16x1xf32>
    %36 = vector.broadcast %35 : vector<16x1xf32> to vector<16x256xf32>
    %37 = arith.mulf %2, %36 : vector<16x256xf32>
    %38 = arith.addf %34, %37 : vector<16x256xf32>
    %c254_i32 = arith.constant 254 : i32
    %39 = tpu.dynamic_rotate %2 by %c254_i32 dim 1 : vector<16x256xf32>, i32 -> vector<16x256xf32>
    %40 = vector.extract_strided_slice %3 {offsets = [0, 5], sizes = [16, 1], strides = [1, 1]} : vector<16x9xf32> to vector<16x1xf32>
    %41 = vector.broadcast %40 : vector<16x1xf32> to vector<16x256xf32>
    %42 = arith.mulf %39, %41 : vector<16x256xf32>
    %c5 = arith.constant 5 : index
    %c0_9 = arith.constant 0 : index
    %43 = vector.load %arg4[%c5, %c0_9] : memref<9x256xf32, #tpu.memory_space<vmem>>, vector<1x256xf32>
    %44 = vector.broadcast %43 : vector<1x256xf32> to vector<16x256xf32>
    %45 = arith.mulf %42, %44 : vector<16x256xf32>
    %46 = arith.addf %38, %45 : vector<16x256xf32>
    %c226_i32 = arith.constant 226 : i32
    %47 = tpu.dynamic_rotate %2 by %c226_i32 dim 1 : vector<16x256xf32>, i32 -> vector<16x256xf32>
    %48 = vector.extract_strided_slice %3 {offsets = [0, 6], sizes = [16, 1], strides = [1, 1]} : vector<16x9xf32> to vector<16x1xf32>
    %49 = vector.broadcast %48 : vector<16x1xf32> to vector<16x256xf32>
    %50 = arith.mulf %47, %49 : vector<16x256xf32>
    %c6 = arith.constant 6 : index
    %c0_10 = arith.constant 0 : index
    %51 = vector.load %arg4[%c6, %c0_10] : memref<9x256xf32, #tpu.memory_space<vmem>>, vector<1x256xf32>
    %52 = vector.broadcast %51 : vector<1x256xf32> to vector<16x256xf32>
    %53 = arith.mulf %50, %52 : vector<16x256xf32>
    %54 = arith.addf %46, %53 : vector<16x256xf32>
    %c224_i32 = arith.constant 224 : i32
    %55 = tpu.dynamic_rotate %2 by %c224_i32 dim 1 : vector<16x256xf32>, i32 -> vector<16x256xf32>
    %56 = vector.extract_strided_slice %3 {offsets = [0, 7], sizes = [16, 1], strides = [1, 1]} : vector<16x9xf32> to vector<16x1xf32>
    %57 = vector.broadcast %56 : vector<16x1xf32> to vector<16x256xf32>
    %58 = arith.mulf %55, %57 : vector<16x256xf32>
    %c7 = arith.constant 7 : index
    %c0_11 = arith.constant 0 : index
    %59 = vector.load %arg4[%c7, %c0_11] : memref<9x256xf32, #tpu.memory_space<vmem>>, vector<1x256xf32>
    %60 = vector.broadcast %59 : vector<1x256xf32> to vector<16x256xf32>
    %61 = arith.mulf %58, %60 : vector<16x256xf32>
    %62 = arith.addf %54, %61 : vector<16x256xf32>
    %c222_i32 = arith.constant 222 : i32
    %63 = tpu.dynamic_rotate %2 by %c222_i32 dim 1 : vector<16x256xf32>, i32 -> vector<16x256xf32>
    %64 = vector.extract_strided_slice %3 {offsets = [0, 8], sizes = [16, 1], strides = [1, 1]} : vector<16x9xf32> to vector<16x1xf32>
    %65 = vector.broadcast %64 : vector<16x1xf32> to vector<16x256xf32>
    %66 = arith.mulf %63, %65 : vector<16x256xf32>
    %c8 = arith.constant 8 : index
    %c0_12 = arith.constant 0 : index
    %67 = vector.load %arg4[%c8, %c0_12] : memref<9x256xf32, #tpu.memory_space<vmem>>, vector<1x256xf32>
    %68 = vector.broadcast %67 : vector<1x256xf32> to vector<16x256xf32>
    %69 = arith.mulf %66, %68 : vector<16x256xf32>
    %70 = arith.addf %62, %69 : vector<16x256xf32>
    %c0_13 = arith.constant 0 : index
    %c0_14 = arith.constant 0 : index
    %71 = vector.load %arg3[%c0_13, %c0_14] : memref<8x16xbf16, #tpu.memory_space<vmem>>, vector<8x16xbf16>
    %72 = arith.truncf %70 : vector<16x256xf32> to vector<16x256xbf16>
    %cst = arith.constant dense<0.000000e+00> : vector<8x256xf32>
    %73 = tpu.matmul %71, %72, %cst {dimension_numbers = #tpu.dot_dimension_numbers<[1], [0], [0], [1], [0, 0, 1, 1], [], []>} : vector<8x16xbf16>, vector<16x256xbf16>, vector<8x256xf32> -> vector<8x256xf32>
    %c0_15 = arith.constant 0 : index
    %c0_16 = arith.constant 0 : index
    %c0_17 = arith.constant 0 : index
    %74 = vector.load %arg5[%c0_15, %c0_16, %c0_17] : memref<1x8x256xf32, #tpu.memory_space<vmem>>, vector<1x8x256xf32>
    %75 = vector.shape_cast %74 : vector<1x8x256xf32> to vector<8x256xf32>
    %76 = vector.shape_cast %73 : vector<8x256xf32> to vector<1x8x256xf32>
    tpu.vector_store %arg5[%c0_15, %c0_16, %c0_17], %76 {strides = array<i32>} : memref<1x8x256xf32, #tpu.memory_space<vmem>>, vector<1x8x256xf32>,
    return
  }
  func.func @transform_0(%arg0: i32) -> (i32, i32, i32) {
    %c0_i32 = arith.constant 0 : i32
    %c0_i32_0 = arith.constant 0 : i32
    %c0_i32_1 = arith.constant 0 : i32
    return %arg0, %c0_i32, %c0_i32_0 : i32, i32, i32
  }
  func.func @transform_1(%arg0: i32) -> (i32, i32) {
    %c0_i32 = arith.constant 0 : i32
    %c0_i32_0 = arith.constant 0 : i32
    %c0_i32_1 = arith.constant 0 : i32
    return %c0_i32, %c0_i32_0 : i32, i32
  }
  func.func @transform_2(%arg0: i32) -> (i32, i32) {
    %c0_i32 = arith.constant 0 : i32
    %c0_i32_0 = arith.constant 0 : i32
    %c0_i32_1 = arith.constant 0 : i32
    return %c0_i32, %c0_i32_0 : i32, i32
  }
  func.func @transform_3(%arg0: i32) -> (i32, i32) {
    %c0_i32 = arith.constant 0 : i32
    %c0_i32_0 = arith.constant 0 : i32
    %c0_i32_1 = arith.constant 0 : i32
    return %c0_i32, %c0_i32_0 : i32, i32
  }
  func.func @transform_4(%arg0: i32) -> (i32, i32, i32) {
    %c0_i32 = arith.constant 0 : i32
    %c0_i32_0 = arith.constant 0 : i32
    %c0_i32_1 = arith.constant 0 : i32
    return %arg0, %c0_i32, %c0_i32_0 : i32, i32, i32
  }
}

</mosaic_0001>

<llo_original>
// kernel: separable_conv2d.1
$region0: #{separable_conv2d.1}
  #allocation0 [shape = 'u32[]', space=smem, size = 0x4, offset = 0x4, fixed_abs, tag = 'smem constant byte address 0x4 - core index']
  #allocation1 [shape = 'u32[144,128]{1,0:T(1,128)}', space=vmem, size = 0x12000, scoped, tag = 'internal scratch']
  %s0 = inlined_call_operand.vmem [shape: bf16[2,16,256], index: 0, kind: input, shape index: {}]
  %s1 = inlined_call_operand.vmem [shape: f32[16,9], index: 1, kind: input, shape index: {}]
  %s2 = inlined_call_operand.vmem [shape: bf16[8,16], index: 2, kind: input, shape index: {}]
  %s3 = inlined_call_operand.vmem [shape: f32[9,256], index: 3, kind: input, shape index: {}]
  %s4 = inlined_call_operand.vmem [shape: f32[2,8,256], index: 4, kind: output, shape index: {}]
  %s5 = sld [smem:[#allocation0]]
  $region49: #{separable_conv2d.1} parent=0
    _
  %s7 = ssub.s32 1, %s5
  %s8 = scalar_select 0, %s7, %s5
  loop: start=0, step=1, limit=4
  $region2: #{separable_conv2d.1} parent=0 // loop_pre_header
    _
  $region3: #{separable_conv2d.1} parent=0 // loop_header
    %s10 = sphi 0, %s14
    %p11 = scmp.ge.s32.totalorder %s10, 4
    %s20 = sphi 0, %s22
    %s23 = sphi 0, %s20
    %s24 = sphi 0, %s23
    %s40 = sphi 0, %s24
    %s44 = sphi 0, %s44
    %s46 = sphi 0, %s44
    %s47 = sphi 0, %s46
    %s61 = sphi 0, %s47
    %s65 = sphi 0, %s65
    %s67 = sphi 0, %s65
    %s68 = sphi 0, %s67
    %s82 = sphi 0, %s68
    %s86 = sphi 0, %s86
    %s88 = sphi 0, %s86
    %s89 = sphi 0, %s88
    %s103 = sphi 0, %s89
    %s109 = sphi 0, %s111
    %s112 = sphi 0, %s109
    %s113 = sphi 0, %s112
    %s129 = sphi 0, %s113
  $region4: #{separable_conv2d.1} parent=0 // loop_header_branch
    %13 = sbr.rel (%p11) target = $region8
  $region5: #{separable_conv2d.1} parent=0 // loop_body
    %s15 = ssub.s32 %s10, 1
    %s16 = ssub.s32 %s10, 2
    %s17 = sadd.s32 %s10, 1
    %s18 = ssub.s32 %s10, %s17
    %p19 = scmp.eq.s32.totalorder %s18, 0
    %s21 = sadd.s32 %s20, 1
    %s22 = scalar_select %p19, %s20, %s21
    %p25 = pneg %p19
    %p26 = scmp.eq.s32.totalorder %s10, 1
    %p27 = por %p25, %p26
    %p28 = scmp.ne.s32.totalorder %s20, %s23
    %p29 = scmp.eq.s32.totalorder %s10, 0
    %p30 = por %p28, %p29
    %p31 = scmp.ne.s32.totalorder %s20, %s23
    %p32 = scmp.eq.s32.totalorder %s15, 1
    %p33 = por %p31, %p32
    %p34 = scmp.ne.s32.totalorder %s23, %s24
    %p35 = scmp.eq.s32.totalorder %s15, 0
    %p36 = por %p34, %p35
    %p37 = scmp.ne.s32.totalorder %s23, %s24
    %p38 = scmp.eq.s32.totalorder %s16, 1
    %p39 = por %p37, %p38
    %p41 = scmp.ne.s32.totalorder %s24, %s40
    %p42 = scmp.eq.s32.totalorder %s16, 0
    %p43 = por %p41, %p42
    %s45 = sadd.s32 %s44, 1
    %p48 = scmp.eq.s32.totalorder %s10, 1
    %p49 = scmp.ne.s32.totalorder %s44, %s46
    %p50 = scmp.eq.s32.totalorder %s10, 0
    %p51 = por %p49, %p50
    %p52 = scmp.ne.s32.totalorder %s44, %s46
    %p53 = scmp.eq.s32.totalorder %s15, 1
    %p54 = por %p52, %p53
    %p55 = scmp.ne.s32.totalorder %s46, %s47
    %p56 = scmp.eq.s32.totalorder %s15, 0
    %p57 = por %p55, %p56
    %p58 = scmp.ne.s32.totalorder %s46, %s47
    %p59 = scmp.eq.s32.totalorder %s16, 1
    %p60 = por %p58, %p59
    %p62 = scmp.ne.s32.totalorder %s47, %s61
    %p63 = scmp.eq.s32.totalorder %s16, 0
    %p64 = por %p62, %p63
    %s66 = sadd.s32 %s65, 1
    %p69 = scmp.eq.s32.totalorder %s10, 1
    %p70 = scmp.ne.s32.totalorder %s65, %s67
    %p71 = scmp.eq.s32.totalorder %s10, 0
    %p72 = por %p70, %p71
    %p73 = scmp.ne.s32.totalorder %s65, %s67
    %p74 = scmp.eq.s32.totalorder %s15, 1
    %p75 = por %p73, %p74
    %p76 = scmp.ne.s32.totalorder %s67, %s68
    %p77 = scmp.eq.s32.totalorder %s15, 0
    %p78 = por %p76, %p77
    %p79 = scmp.ne.s32.totalorder %s67, %s68
    %p80 = scmp.eq.s32.totalorder %s16, 1
    %p81 = por %p79, %p80
    %p83 = scmp.ne.s32.totalorder %s68, %s82
    %p84 = scmp.eq.s32.totalorder %s16, 0
    %p85 = por %p83, %p84
    %s87 = sadd.s32 %s86, 1
    %p90 = scmp.eq.s32.totalorder %s10, 1
    %p91 = scmp.ne.s32.totalorder %s86, %s88
    %p92 = scmp.eq.s32.totalorder %s10, 0
    %p93 = por %p91, %p92
    %p94 = scmp.ne.s32.totalorder %s86, %s88
    %p95 = scmp.eq.s32.totalorder %s15, 1
    %p96 = por %p94, %p95
    %p97 = scmp.ne.s32.totalorder %s88, %s89
    %p98 = scmp.eq.s32.totalorder %s15, 0
    %p99 = por %p97, %p98
    %p100 = scmp.ne.s32.totalorder %s88, %s89
    %p101 = scmp.eq.s32.totalorder %s16, 1
    %p102 = por %p100, %p101
    %p104 = scmp.ne.s32.totalorder %s89, %s103
    %p105 = scmp.eq.s32.totalorder %s16, 0
    %p106 = por %p104, %p105
    %s107 = ssub.s32 %s10, %s17
    %p108 = scmp.eq.s32.totalorder %s107, 0
    %s110 = sadd.s32 %s109, 1
    %s111 = scalar_select %p108, %s109, %s110
    %p114 = pneg %p108
    %p115 = scmp.eq.s32.totalorder %s10, 1
    %p116 = por %p114, %p115
    %p117 = scmp.ne.s32.totalorder %s109, %s112
    %p118 = scmp.eq.s32.totalorder %s10, 0
    %p119 = por %p117, %p118
    %p120 = scmp.ne.s32.totalorder %s109, %s112
    %p121 = scmp.eq.s32.totalorder %s15, 1
    %p122 = por %p120, %p121
    %p123 = scmp.ne.s32.totalorder %s112, %s113
    %p124 = scmp.eq.s32.totalorder %s15, 0
    %p125 = por %p123, %p124
    %p126 = scmp.ne.s32.totalorder %s112, %s113
    %p127 = scmp.eq.s32.totalorder %s16, 1
    %p128 = por %p126, %p127
    %p130 = scmp.ne.s32.totalorder %s113, %s129
    %p131 = scmp.eq.s32.totalorder %s16, 0
    %p132 = por %p130, %p131
    %p133 = scmp.le.s32.totalorder 1, %s10
    %p134 = scmp.lt.s32.totalorder %s10, 3
    %p135 = pnand %p133, %p134
    %p136 = pneg %p135
    // Predicated region
    $region9: #{separable_conv2d.1} parent=5 // pred_check
      _
    $region10: #{separable_conv2d.1} parent=5 // pred_check_branch
      %138 = sbr.rel (%p135) target = $region12
    $region11: #{separable_conv2d.1} parent=5 // pred_region
      %s139 = ssub.s32 %s10, 1
      // Predicated region
      $region13: #{separable_conv2d.1} parent=11 // pred_check
        %p140 = pneg %p57
      $region14: #{separable_conv2d.1} parent=11 // pred_check_branch
        %142 = sbr.rel (%p140) target = $region16
      $region15: #{separable_conv2d.1} parent=11 // pred_region
        _
      $region16: #{separable_conv2d.1} parent=11 // pred_fallthru
        _
      // Predicated region
      $region17: #{separable_conv2d.1} parent=11 // pred_check
        %p143 = pneg %p78
      $region18: #{separable_conv2d.1} parent=11 // pred_check_branch
        %145 = sbr.rel (%p143) target = $region20
      $region19: #{separable_conv2d.1} parent=11 // pred_region
        _
      $region20: #{separable_conv2d.1} parent=11 // pred_fallthru
        _
      // Predicated region
      $region21: #{separable_conv2d.1} parent=11 // pred_check
        %p146 = pneg %p99
      $region22: #{separable_conv2d.1} parent=11 // pred_check_branch
        %148 = sbr.rel (%p146) target = $region24
      $region23: #{separable_conv2d.1} parent=11 // pred_region
        _
      $region24: #{separable_conv2d.1} parent=11 // pred_fallthru
        _
    $region12: #{separable_conv2d.1} parent=5 // pred_fallthru
      _
    %p149 = scmp.lt.s32.totalorder %s10, 2
    // Predicated region
    $region25: #{separable_conv2d.1} parent=5 // pred_check
      %p150 = pneg %p149
    $region26: #{separable_conv2d.1} parent=5 // pred_check_branch
      %152 = sbr.rel (%p150) target = $region28
    $region27: #{separable_conv2d.1} parent=5 // pred_region
      // Predicated region
      $region29: #{separable_conv2d.1} parent=27 // pred_check
        %p153 = pneg %p30
      $region30: #{separable_conv2d.1} parent=27 // pred_check_branch
        %155 = sbr.rel (%p153) target = $region32
      $region31: #{separable_conv2d.1} parent=27 // pred_region
        %p156 = scmp.lt.s32.totalorder %s10, 1
        %s157 = scalar_select %p156, %s10, 1
        %s158 = smul.addr %s157, 4
        %s159 = smul.addr %s158, 4
        %s160 = scalar_lea.vmem %s0, %s159
      $region32: #{separable_conv2d.1} parent=27 // pred_fallthru
        _
    $region28: #{separable_conv2d.1} parent=5 // pred_fallthru
      _
    %p161 = scmp.le.s32.totalorder 1, %s10
    %p162 = scmp.lt.s32.totalorder %s10, 3
    %p163 = pnand %p161, %p162
    %p164 = pneg %p163
    // Predicated region
    $region33: #{separable_conv2d.1} parent=5 // pred_check
      _
    $region34: #{separable_conv2d.1} parent=5 // pred_check_branch
      %166 = sbr.rel (%p163) target = $region36
    $region35: #{separable_conv2d.1} parent=5 // pred_region
      %s167 = ssub.s32 %s10, 1
      %p168 = scmp.lt.s32.totalorder %s15, 1
      %s169 = scalar_select %p168, %s15, 1
      %s170 = smul.addr %s169, 4
      %s171 = smul.addr %s170, 4
      %s172 = scalar_lea.vmem %s0, %s171
      %p173 = pneg %p36
      %p174 = pneg %p33
      %p175 = pneg %p57
      %p176 = pneg %p54
      %p177 = pneg %p78
      %p178 = pneg %p75
      %p179 = pneg %p99
      %p180 = pneg %p96
      %p181 = pneg %p125
      %p182 = pneg %p122
      %p183 = scmp.lt.s32.totalorder %s15, 1
      %s184 = scalar_select %p183, %s15, 1
      %s185 = smul.addr %s184, 2
      %s186 = smul.addr %s185, 8
      %s187 = scalar_lea.vmem %s4, %s186
      %p188 = scmp.lt.s32.totalorder %s15, 1
      %s189 = scalar_select %p188, %s15, 1
      %s190 = smul.addr %s189, 4
      %s191 = smul.addr %s190, 4
      %s192 = scalar_lea.vmem %s0, %s191
      %p193 = scmp.lt.s32.totalorder %s15, 1
      %s194 = scalar_select %p193, %s15, 1
      %s195 = smul.addr %s194, 2
      %s196 = smul.addr %s195, 8
      %s197 = scalar_lea.vmem %s4, %s196
      %v199 = vld [vmem:[%s192] sm:$0xff]
      %v200 = vld [vmem:[%s192 + $0x8] sm:$0xff]
      %v201 = vunpack.c.l.bf16 %v199
      %v202 = vunpack.c.h.bf16 %v199
      %v203 = vunpack.c.l.bf16 %v200
      %v204 = vunpack.c.h.bf16 %v200
      %v205 = vld [vmem:[%s1] sm:$0xff]
      %v206 = vld [vmem:[%s1 + $0x8] sm:$0xff]
      %207 = vrot.lane.b32.xlu0 %v201, 34
      %v208 = vpop.permute.xlu0 %207
      %209 = vrot.lane.b32.xlu0 %v203, 34
      %v210 = vpop.permute.xlu0 %209
      %211 = vrot.lane.b32.xlu0 %v202, 34
      %v212 = vpop.permute.xlu0 %211
      %213 = vrot.lane.b32.xlu0 %v204, 34
      %v214 = vpop.permute.xlu0 %213
      %v215 = vlaneseq
      %v216 = vand.u32 %v215, 127
      %vm217 = vcmp.lt.s32.totalorder %v216, 34
      %v218 = vsel %vm217, %v208, %v212
      %v219 = vsel %vm217, %v210, %v214
      %v220 = vsel %vm217, %v212, %v208
      %v221 = vsel %vm217, %v214, %v210
      %223 = vset.pattern.permute.xlu0 0
      %224 = vperm.xlu0 %223, %v205
      %v225 = vpop.permute.xlu0 %224
      %228 = vset.pattern.permute.xlu0 0
      %229 = vperm.xlu0 %228, %v206
      %v230 = vpop.permute.xlu0 %229
      %v232 = vmul.f32 %v220, %v225
      %v233 = vmul.f32 %v218, %v225
      %v234 = vmul.f32 %v221, %v230
      %v235 = vmul.f32 %v219, %v230
      %v236 = vld [vmem:[%s3] ss:$8 sm:$0x3]
      %v238 = vlaneseq
      %v239 = vshrl.u32 %v238, 7
      %v240 = vsub.s32 0, %v239
      %v241 = vrot.slane %v236, %v240
      %v242 = vlaneseq
      %v243 = vshrl.u32 %v242, 7
      %v244 = vsub.s32 1, %v243
      %v245 = vrot.slane %v236, %v244
      %v248 = vmul.f32 %v232, %v241
      %v249 = vmul.f32 %v233, %v245
      %v250 = vmul.f32 %v234, %v241
      %v251 = vmul.f32 %v235, %v245
      %252 = vrot.lane.b32.xlu0 %v201, 32
      %v253 = vpop.permute.xlu0 %252
      %254 = vrot.lane.b32.xlu0 %v203, 32
      %v255 = vpop.permute.xlu0 %254
      %256 = vrot.lane.b32.xlu0 %v202, 32
      %v257 = vpop.permute.xlu0 %256
      %258 = vrot.lane.b32.xlu0 %v204, 32
      %v259 = vpop.permute.xlu0 %258
      %vm260 = vcmp.lt.s32.totalorder %v216, 32
      %v261 = vsel %vm260, %v253, %v257
      %v262 = vsel %vm260, %v255, %v259
      %v263 = vsel %vm260, %v257, %v253
      %v264 = vsel %vm260, %v259, %v255
      %265 = vset.pattern.permute.xlu0 1
      %266 = vperm.xlu0 %265, %v205
      %v267 = vpop.permute.xlu0 %266
      %269 = vset.pattern.permute.xlu0 1
      %270 = vperm.xlu0 %269, %v206
      %v271 = vpop.permute.xlu0 %270
      %v273 = vmul.f32 %v263, %v267
      %v274 = vmul.f32 %v261, %v267
      %v275 = vmul.f32 %v264, %v271
      %v276 = vmul.f32 %v262, %v271
      %s277 = scalar_lea.vmem %s3, 1
      %v278 = vld [vmem:[%s277] ss:$8 sm:$0x3]
      %v280 = vlaneseq
      %v281 = vshrl.u32 %v280, 7
      %v282 = vsub.s32 0, %v281
      %v283 = vrot.slane %v278, %v282
      %v284 = vlaneseq
      %v285 = vshrl.u32 %v284, 7
      %v286 = vsub.s32 1, %v285
      %v287 = vrot.slane %v278, %v286
      %v290 = vmul.f32 %v273, %v283
      %v291 = vmul.f32 %v274, %v287
      %v292 = vmul.f32 %v275, %v283
      %v293 = vmul.f32 %v276, %v287
      %v294 = vadd.f32 %v248, %v290
      %v295 = vadd.f32 %v249, %v291
      %v296 = vadd.f32 %v250, %v292
      %v297 = vadd.f32 %v251, %v293
      %298 = vrot.lane.b32.xlu0 %v201, 30
      %v299 = vpop.permute.xlu0 %298
      %300 = vrot.lane.b32.xlu0 %v203, 30
      %v301 = vpop.permute.xlu0 %300
      %302 = vrot.lane.b32.xlu0 %v202, 30
      %v303 = vpop.permute.xlu0 %302
      %304 = vrot.lane.b32.xlu0 %v204, 30
      %v305 = vpop.permute.xlu0 %304
      %vm306 = vcmp.lt.s32.totalorder %v216, 30
      %v307 = vsel %vm306, %v299, %v303
      %v308 = vsel %vm306, %v301, %v305
      %v309 = vsel %vm306, %v303, %v299
      %v310 = vsel %vm306, %v305, %v301
      %311 = vset.pattern.permute.xlu0 2
      %312 = vperm.xlu0 %311, %v205
      %v313 = vpop.permute.xlu0 %312
      %315 = vset.pattern.permute.xlu0 2
      %316 = vperm.xlu0 %315, %v206
      %v317 = vpop.permute.xlu0 %316
      %v319 = vmul.f32 %v309, %v313
      %v320 = vmul.f32 %v307, %v313
      %v321 = vmul.f32 %v310, %v317
      %v322 = vmul.f32 %v308, %v317
      %s323 = scalar_lea.vmem %s3, 2
      %v324 = vld [vmem:[%s323] ss:$8 sm:$0x3]
      %v326 = vlaneseq
      %v327 = vshrl.u32 %v326, 7
      %v328 = vsub.s32 0, %v327
      %v329 = vrot.slane %v324, %v328
      %v330 = vlaneseq
      %v331 = vshrl.u32 %v330, 7
      %v332 = vsub.s32 1, %v331
      %v333 = vrot.slane %v324, %v332
      %v336 = vmul.f32 %v319, %v329
      %v337 = vmul.f32 %v320, %v333
      %v338 = vmul.f32 %v321, %v329
      %v339 = vmul.f32 %v322, %v333
      %v340 = vadd.f32 %v294, %v336
      %v341 = vadd.f32 %v295, %v337
      %v342 = vadd.f32 %v296, %v338
      %v343 = vadd.f32 %v297, %v339
      %344 = vrot.lane.b32.xlu0 %v201, 2
      %v345 = vpop.permute.xlu0 %344
      %346 = vrot.lane.b32.xlu0 %v203, 2
      %v347 = vpop.permute.xlu0 %346
      %348 = vrot.lane.b32.xlu0 %v202, 2
      %v349 = vpop.permute.xlu0 %348
      %350 = vrot.lane.b32.xlu0 %v204, 2
      %v351 = vpop.permute.xlu0 %350
      %vm352 = vcmp.lt.s32.totalorder %v216, 2
      %v353 = vsel %vm352, %v345, %v349
      %v354 = vsel %vm352, %v347, %v351
      %v355 = vsel %vm352, %v349, %v345
      %v356 = vsel %vm352, %v351, %v347
      %357 = vset.pattern.permute.xlu0 3
      %358 = vperm.xlu0 %357, %v205
      %v359 = vpop.permute.xlu0 %358
      %361 = vset.pattern.permute.xlu0 3
      %362 = vperm.xlu0 %361, %v206
      %v363 = vpop.permute.xlu0 %362
      %v365 = vmul.f32 %v355, %v359
      %v366 = vmul.f32 %v353, %v359
      %v367 = vmul.f32 %v356, %v363
      %v368 = vmul.f32 %v354, %v363
      %s369 = scalar_lea.vmem %s3, 3
      %v370 = vld [vmem:[%s369] ss:$8 sm:$0x3]
      %v372 = vlaneseq
      %v373 = vshrl.u32 %v372, 7
      %v374 = vsub.s32 0, %v373
      %v375 = vrot.slane %v370, %v374
      %v376 = vlaneseq
      %v377 = vshrl.u32 %v376, 7
      %v378 = vsub.s32 1, %v377
      %v379 = vrot.slane %v370, %v378
      %v382 = vmul.f32 %v365, %v375
      %v383 = vmul.f32 %v366, %v379
      %v384 = vmul.f32 %v367, %v375
      %v385 = vmul.f32 %v368, %v379
      %v386 = vadd.f32 %v340, %v382
      %v387 = vadd.f32 %v341, %v383
      %v388 = vadd.f32 %v342, %v384
      %v389 = vadd.f32 %v343, %v385
      %390 = vset.pattern.permute.xlu0 4
      %391 = vperm.xlu0 %390, %v205
      %v392 = vpop.permute.xlu0 %391
      %394 = vset.pattern.permute.xlu0 4
      %395 = vperm.xlu0 %394, %v206
      %v396 = vpop.permute.xlu0 %395
      %v398 = vmul.f32 %v201, %v392
      %v399 = vmul.f32 %v202, %v392
      %v400 = vmul.f32 %v203, %v396
      %v401 = vmul.f32 %v204, %v396
      %v402 = vadd.f32 %v386, %v398
      %v403 = vadd.f32 %v387, %v399
      %v404 = vadd.f32 %v388, %v400
      %v405 = vadd.f32 %v389, %v401
      %406 = vrot.lane.b32.xlu0 %v201, 126
      %v407 = vpop.permute.xlu0 %406
      %408 = vrot.lane.b32.xlu0 %v203, 126
      %v409 = vpop.permute.xlu0 %408
      %410 = vrot.lane.b32.xlu0 %v202, 126
      %v411 = vpop.permute.xlu0 %410
      %412 = vrot.lane.b32.xlu0 %v204, 126
      %v413 = vpop.permute.xlu0 %412
      %vm414 = vcmp.lt.s32.totalorder %v216, 126
      %v415 = vsel %vm414, %v407, %v411
      %v416 = vsel %vm414, %v409, %v413
      %v417 = vsel %vm414, %v411, %v407
      %v418 = vsel %vm414, %v413, %v409
      %419 = vset.pattern.permute.xlu0 5
      %420 = vperm.xlu0 %419, %v205
      %v421 = vpop.permute.xlu0 %420
      %423 = vset.pattern.permute.xlu0 5
      %424 = vperm.xlu0 %423, %v206
      %v425 = vpop.permute.xlu0 %424
      %v427 = vmul.f32 %v415, %v421
      %v428 = vmul.f32 %v417, %v421
      %v429 = vmul.f32 %v416, %v425
      %v430 = vmul.f32 %v418, %v425
      %s431 = scalar_lea.vmem %s3, 5
      %v432 = vld [vmem:[%s431] ss:$8 sm:$0x3]
      %v434 = vlaneseq
      %v435 = vshrl.u32 %v434, 7
      %v436 = vsub.s32 0, %v435
      %v437 = vrot.slane %v432, %v436
      %v438 = vlaneseq
      %v439 = vshrl.u32 %v438, 7
      %v440 = vsub.s32 1, %v439
      %v441 = vrot.slane %v432, %v440
      %v444 = vmul.f32 %v427, %v437
      %v445 = vmul.f32 %v428, %v441
      %v446 = vmul.f32 %v429, %v437
      %v447 = vmul.f32 %v430, %v441
      %v448 = vadd.f32 %v402, %v444
      %v449 = vadd.f32 %v403, %v445
      %v450 = vadd.f32 %v404, %v446
      %v451 = vadd.f32 %v405, %v447
      %452 = vrot.lane.b32.xlu0 %v201, 98
      %v453 = vpop.permute.xlu0 %452
      %454 = vrot.lane.b32.xlu0 %v203, 98
      %v455 = vpop.permute.xlu0 %454
      %456 = vrot.lane.b32.xlu0 %v202, 98
      %v457 = vpop.permute.xlu0 %456
      %458 = vrot.lane.b32.xlu0 %v204, 98
      %v459 = vpop.permute.xlu0 %458
      %vm460 = vcmp.lt.s32.totalorder %v216, 98
      %v461 = vsel %vm460, %v453, %v457
      %v462 = vsel %vm460, %v455, %v459
      %v463 = vsel %vm460, %v457, %v453
      %v464 = vsel %vm460, %v459, %v455
      %465 = vset.pattern.permute.xlu0 6
      %466 = vperm.xlu0 %465, %v205
      %v467 = vpop.permute.xlu0 %466
      %469 = vset.pattern.permute.xlu0 6
      %470 = vperm.xlu0 %469, %v206
      %v471 = vpop.permute.xlu0 %470
      %v473 = vmul.f32 %v461, %v467
      %v474 = vmul.f32 %v463, %v467
      %v475 = vmul.f32 %v462, %v471
      %v476 = vmul.f32 %v464, %v471
      %s477 = scalar_lea.vmem %s3, 6
      %v478 = vld [vmem:[%s477] ss:$8 sm:$0x3]
      %v480 = vlaneseq
      %v481 = vshrl.u32 %v480, 7
      %v482 = vsub.s32 0, %v481
      %v483 = vrot.slane %v478, %v482
      %v484 = vlaneseq
      %v485 = vshrl.u32 %v484, 7
      %v486 = vsub.s32 1, %v485
      %v487 = vrot.slane %v478, %v486
      %v490 = vmul.f32 %v473, %v483
      %v491 = vmul.f32 %v474, %v487
      %v492 = vmul.f32 %v475, %v483
      %v493 = vmul.f32 %v476, %v487
      %v494 = vadd.f32 %v448, %v490
      %v495 = vadd.f32 %v449, %v491
      %v496 = vadd.f32 %v450, %v492
      %v497 = vadd.f32 %v451, %v493
      %498 = vrot.lane.b32.xlu0 %v201, 96
      %v499 = vpop.permute.xlu0 %498
      %500 = vrot.lane.b32.xlu0 %v203, 96
      %v501 = vpop.permute.xlu0 %500
      %502 = vrot.lane.b32.xlu0 %v202, 96
      %v503 = vpop.permute.xlu0 %502
      %504 = vrot.lane.b32.xlu0 %v204, 96
      %v505 = vpop.permute.xlu0 %504
      %vm506 = vcmp.lt.s32.totalorder %v216, 96
      %v507 = vsel %vm506, %v499, %v503
      %v508 = vsel %vm506, %v501, %v505
      %v509 = vsel %vm506, %v503, %v499
      %v510 = vsel %vm506, %v505, %v501
      %511 = vset.pattern.permute.xlu0 7
      %512 = vperm.xlu0 %511, %v205
      %v513 = vpop.permute.xlu0 %512
      %515 = vset.pattern.permute.xlu0 7
      %516 = vperm.xlu0 %515, %v206
      %v517 = vpop.permute.xlu0 %516
      %v519 = vmul.f32 %v507, %v513
      %v520 = vmul.f32 %v509, %v513
      %v521 = vmul.f32 %v508, %v517
      %v522 = vmul.f32 %v510, %v517
      %s523 = scalar_lea.vmem %s3, 7
      %v524 = vld [vmem:[%s523] ss:$8 sm:$0x3]
      %v526 = vlaneseq
      %v527 = vshrl.u32 %v526, 7
      %v528 = vsub.s32 0, %v527
      %v529 = vrot.slane %v524, %v528
      %v530 = vlaneseq
      %v531 = vshrl.u32 %v530, 7
      %v532 = vsub.s32 1, %v531
      %v533 = vrot.slane %v524, %v532
      %v536 = vmul.f32 %v519, %v529
      %v537 = vmul.f32 %v520, %v533
      %v538 = vmul.f32 %v521, %v529
      %v539 = vmul.f32 %v522, %v533
      %v540 = vadd.f32 %v494, %v536
      %v541 = vadd.f32 %v495, %v537
      %v542 = vadd.f32 %v496, %v538
      %v543 = vadd.f32 %v497, %v539
      %544 = vrot.lane.b32.xlu0 %v201, 94
      %v545 = vpop.permute.xlu0 %544
      %546 = vrot.lane.b32.xlu0 %v203, 94
      %v547 = vpop.permute.xlu0 %546
      %548 = vrot.lane.b32.xlu0 %v202, 94
      %v549 = vpop.permute.xlu0 %548
      %550 = vrot.lane.b32.xlu0 %v204, 94
      %v551 = vpop.permute.xlu0 %550
      %vm552 = vcmp.lt.s32.totalorder %v216, 94
      %v553 = vsel %vm552, %v545, %v549
      %v554 = vsel %vm552, %v547, %v551
      %v555 = vsel %vm552, %v549, %v545
      %v556 = vsel %vm552, %v551, %v547
      %557 = vset.pattern.permute.xlu0 8
      %558 = vperm.xlu0 %557, %v205
      %v559 = vpop.permute.xlu0 %558
      %561 = vset.pattern.permute.xlu0 8
      %562 = vperm.xlu0 %561, %v206
      %v563 = vpop.permute.xlu0 %562
      %v565 = vmul.f32 %v553, %v559
      %v566 = vmul.f32 %v555, %v559
      %v567 = vmul.f32 %v554, %v563
      %v568 = vmul.f32 %v556, %v563
      %s569 = scalar_lea.vmem %s3, 16
      %v570 = vld [vmem:[%s569] ss:$8 sm:$0x3]
      %v572 = vlaneseq
      %v573 = vshrl.u32 %v572, 7
      %v574 = vsub.s32 0, %v573
      %v575 = vrot.slane %v570, %v574
      %v576 = vlaneseq
      %v577 = vshrl.u32 %v576, 7
      %v578 = vsub.s32 1, %v577
      %v579 = vrot.slane %v570, %v578
      %v582 = vmul.f32 %v565, %v575
      %v583 = vmul.f32 %v566, %v579
      %v584 = vmul.f32 %v567, %v575
      %v585 = vmul.f32 %v568, %v579
      %v586 = vadd.f32 %v540, %v582
      %v587 = vadd.f32 %v541, %v583
      %v588 = vadd.f32 %v542, %v584
      %v589 = vadd.f32 %v543, %v585
      %v590 = vld [vmem:[%s2] sm:$0xf]
      %v591 = vpack.c.bf16 %v588, %v586
      %v592 = vpack.c.bf16 %v589, %v587
      %vm593 = vcmask 130048
      %v595 = vsel %vm593, %v590, 0
      %597 = vmatprep.subr.bf16.mxu0 0
      %598 = vmatpush1.bf16.msra.mxu0 0
      %599 = vmatprep.subr.bf16.mxu0 0
      %600 = vmatpush1.bf16.msra.mxu0 0
      %601 = vmatprep.subr.bf16.mxu0 0
      %602 = vmatpush1.bf16.msra.mxu0 0
      %603 = vmatprep.subr.bf16.mxu0 0
      %604 = vmatpush1.bf16.msra.mxu0 0
      %605 = vmatprep.subr.bf16.mxu0 0
      %606 = vmatpush1.bf16.msra.mxu0 0
      %607 = vmatprep.subr.bf16.mxu0 0
      %608 = vmatpush1.bf16.msra.mxu0 0
      %609 = vmatprep.subr.bf16.mxu0 0
      %610 = vmatpush1.bf16.msra.mxu0 0
      %611 = vmatprep.subr.bf16.mxu0 %v592
      %612 = vmatpush1.bf16.msra.mxu0 %v591
      %613 = vmatprep.subr.bf16.mxu0 0
      %614 = vmatpush2.bf16.msra.mxu0 0
      %615 = vmatprep.subr.bf16.mxu0 0
      %616 = vmatpush2.bf16.msra.mxu0 0
      %617 = vmatprep.subr.bf16.mxu0 0
      %618 = vmatpush2.bf16.msra.mxu0 0
      %619 = vmatprep.subr.bf16.mxu0 0
      %620 = vmatpush2.bf16.msra.mxu0 0
      %621 = vmatprep.subr.bf16.mxu0 0
      %622 = vmatpush2.bf16.msra.mxu0 0
      %623 = vmatprep.subr.bf16.mxu0 0
      %624 = vmatpush2.bf16.msra.mxu0 0
      %625 = vmatprep.subr.bf16.mxu0 0
      %626 = vmatpush2.bf16.msra.mxu0 0
      %627 = vmatprep.subr.bf16.mxu0 0
      %628 = vmatpush2.bf16.msra.mxu0 0
      %629 = vmatprep.mubr.bf16.mxu0 0
      %630 = vmatmul.mubr.bf16.gmra.mxu0 %v595
      %v631 = vpop.f32.mrf.mxu0
      %v632 = vadd.f32 0.0, %v631
      %v633 = vpop.f32.mrf.mxu0
      %v634 = vadd.f32 0.0, %v633
      %v635 = vpop.f32.mrf.mxu0
      %v636 = vpop.f32.mrf.mxu0
      %637 = vdwg.mxu0
      %638 = vst [vmem:[%s197] sm:$0xff] %v632
      %639 = vst [vmem:[%s197 + $0x8] sm:$0xff] %v634
      %p640 = scmp.lt.s32.totalorder %s15, 1
      %s641 = scalar_select %p640, %s15, 1
      %s642 = smul.addr %s641, 2
      %s643 = smul.addr %s642, 8
      %s644 = scalar_lea.vmem %s4, %s643
      // Predicated region
      $region37: #{separable_conv2d.1} parent=35 // pred_check
        %p645 = pneg %p122
      $region38: #{separable_conv2d.1} parent=35 // pred_check_branch
        %647 = sbr.rel (%p645) target = $region40
      $region39: #{separable_conv2d.1} parent=35 // pred_region
        _
      $region40: #{separable_conv2d.1} parent=35 // pred_fallthru
        _
    $region36: #{separable_conv2d.1} parent=5 // pred_fallthru
      _
    %p648 = scmp.le.s32.totalorder 2, %s10
    // Predicated region
    $region41: #{separable_conv2d.1} parent=5 // pred_check
      %p649 = pneg %p648
    $region42: #{separable_conv2d.1} parent=5 // pred_check_branch
      %651 = sbr.rel (%p649) target = $region44
    $region43: #{separable_conv2d.1} parent=5 // pred_region
      %s652 = ssub.s32 %s10, 2
      // Predicated region
      $region45: #{separable_conv2d.1} parent=43 // pred_check
        %p653 = pneg %p128
      $region46: #{separable_conv2d.1} parent=43 // pred_check_branch
        %655 = sbr.rel (%p653) target = $region48
      $region47: #{separable_conv2d.1} parent=43 // pred_region
        %p656 = scmp.lt.s32.totalorder %s16, 1
        %s657 = scalar_select %p656, %s16, 1
        %s658 = smul.addr %s657, 2
        %s659 = smul.addr %s658, 8
        %s660 = scalar_lea.vmem %s4, %s659
      $region48: #{separable_conv2d.1} parent=43 // pred_fallthru
        _
    $region44: #{separable_conv2d.1} parent=5 // pred_fallthru
      _
  $region6: #{separable_conv2d.1} parent=0 // loop_footer
    %s14 = sadd.s32 1, %s10
  $region7: #{separable_conv2d.1} parent=0 // loop_footer_branch
    %9 = sbr.rel target = $region3
  $region8: #{separable_conv2d.1} parent=0 // loop_exit
    _

</llo_original>
